<compile_context>
chip_gen: v5e
topology: v5e:2x2
jax: 0.10.0
libtpu: 0.0.40
codegen_flags: <defaults>
</compile_context>

<pallas_src>
import jax
import jax.numpy as jnp
from jax.experimental import pallas as pl
from jax.experimental.pallas import tpu as pltpu


def _make_kernel(bt, ni, use_vpu):
    def kernel(x_ref, w_ref, shift_ref, res_ref, o_ref):
        # x_ref:     (bt, ni, tl)  input tile
        # w_ref:     (nf, ni)      conv weight with BN scale folded in
        # shift_ref: (nf, 1)       beta - running_mean * scale (f32)
        # res_ref:   (bt, nf, tl)  residual (`out`) tile — aliased with o_ref
        # o_ref:     (bt, nf, tl)  result tile
        nf = o_ref.shape[1]
        tl = o_ref.shape[2]
        w = w_ref[...]
        # Hoist the per-channel shift broadcast out of the unrolled batch loop
        # (JAX does not CSE broadcast_in_dim).
        shift_b = jnp.broadcast_to(shift_ref[...], (nf, tl))
        for b in range(bt):  # bt is a small compile-time constant: static unroll
            res = res_ref[b].astype(jnp.float32)
            if use_vpu:
                # Tiny contraction dim: unrolled VPU FMAs instead of an MXU
                # matmul (K<=8 would pad to a full MXU pass for ~no FLOPs).
                xb = x_ref[b].astype(jnp.float32)
                acc = res + shift_b
                for c in range(ni):
                    acc = acc + w[:, c:c + 1] * xb[c:c + 1, :]
            else:
                conv = jnp.dot(w, x_ref[b].astype(w.dtype),
                               preferred_element_type=jnp.float32)
                acc = res + conv + shift_b
            o_ref[b] = jnp.maximum(acc, 0.0).astype(o_ref.dtype)
    return kernel


def _choose_tl(L, max_tl):
    """Pick the L tile. Prefer no padding; lane-dense (mult. of 128) tiles."""
    if L <= max_tl:
        return L, L                         # single full-extent block
    tl_cap = max(128, (max_tl // 128) * 128)
    for tl in range(tl_cap, 0, -128):       # largest mult-of-128 divisor of L
        if L % tl == 0:
            return tl, L
    tl = tl_cap                             # fallback: pad (rare)
    return tl, pl.cdiv(L, tl) * tl


def shortcut1d(inp, out, weight, gamma, beta, running_mean, running_var,
               eps=1e-5, max_tl=1024, max_bt=8, matmul_dtype=None):
    """Fused Shortcut1d forward.

    inp: (B, ni, L), out: (B, nf, L) residual, weight: (nf, ni, 1).
    Returns (B, nf, L) = relu(out + bn(conv1x1(inp))).

    Contract: `out` is consumed (aliased into the result). Callers should
    donate it at their jax.jit boundary (donate_argnums) so the alias avoids
    a defensive output-sized copy.
    """
    B, ni, L = inp.shape
    Bo, nf, Lo = out.shape
    assert Bo == B and Lo == L

    # ---- Fold eval-mode BatchNorm into the conv weight + per-channel shift.
    scale = (gamma.astype(jnp.float32) /
             jnp.sqrt(running_var.astype(jnp.float32) + eps))
    w = weight.reshape(nf, ni).astype(jnp.float32) * scale[:, None]
    shift = (beta.astype(jnp.float32) -
             running_mean.astype(jnp.float32) * scale).reshape(nf, 1)

    # ---- Compute path: VPU FMAs for tiny ni, MXU matmul otherwise.
    use_vpu = ni <= 8
    if matmul_dtype is None:
        matmul_dtype = jnp.bfloat16 if inp.dtype == jnp.bfloat16 else jnp.float32
    if not use_vpu:
        w = w.astype(matmul_dtype)          # bf16 weights -> 1 MXU pass, not 3

    # ---- L tiling (pad-free whenever possible).
    tl, L_pad = _choose_tl(L, max_tl)
    if L_pad != L:
        pad = ((0, 0), (0, 0), (0, L_pad - L))
        inp = jnp.pad(inp, pad)
        out = jnp.pad(out, pad)

    # ---- Batch packing: hit ~2 MiB of f32 output per step, VMEM-capped.
    target_out_elems = 512 * 1024           # ~2 MiB f32 output per grid step
    tile_vmem_budget = 24 * 1024 * 1024     # double-buffered footprint (v7x-safe)
    in_b = jnp.dtype(inp.dtype).itemsize
    out_b = jnp.dtype(out.dtype).itemsize

    def tile_footprint(bt_):
        x_t = bt_ * ni * tl * in_b
        ro_t = 2 * bt_ * nf * tl * out_b    # residual tile + output tile
        return 2 * (x_t + ro_t)             # double-buffered pipeline

    divisors = [d for d in range(1, min(B, max_bt) + 1) if B % d == 0]
    bt = 1
    for d in divisors:
        if d * nf * tl <= target_out_elems and tile_footprint(d) <= tile_vmem_budget:
            bt = d

    # v7x has 2 TensorCores: keep >=2 grid steps whenever possible.
    l_tiles = L_pad // tl
    while bt > 1 and (B // bt) * l_tiles < 2:
        bt = max(d for d in divisors if d < bt)

    grid = (B // bt, l_tiles)

    y = pl.pallas_call(
        _make_kernel(bt, ni, use_vpu),
        out_shape=jax.ShapeDtypeStruct((B, nf, L_pad), out.dtype),
        grid=grid,
        in_specs=[
            pl.BlockSpec((bt, ni, tl), lambda b, l: (b, 0, l)),   # inp
            pl.BlockSpec((nf, ni), lambda b, l: (0, 0)),          # folded conv W
            pl.BlockSpec((nf, 1), lambda b, l: (0, 0)),           # bn shift
            pl.BlockSpec((bt, nf, tl), lambda b, l: (b, 0, l)),   # residual (out)
        ],
        out_specs=pl.BlockSpec((bt, nf, tl), lambda b, l: (b, 0, l)),
        input_output_aliases={3: 0},        # reuse residual HBM buffer as output
        compiler_params=pltpu.CompilerParams(
            dimension_semantics=("parallel", "parallel"),
            vmem_limit_bytes=40 * 1024 * 1024,  # > v5e 16MiB / v6e-v7x 32MiB defaults
        ),
    )(inp, w, shift, out)

    if L_pad != L:
        y = y[:, :, :L]
    return y


if __name__ == "__main__":
    # Small shapes consistent with the module: inp (B, ni, L), out (B, nf, L).
    B, ni, nf, L = 2, 4, 8, 16

    key = jax.random.PRNGKey(0)
    k_inp, k_out, k_w, k_g, k_b, k_m, k_v = jax.random.split(key, 7)

    inp = jax.random.normal(k_inp, (B, ni, L), dtype=jnp.float32)
    out = jax.random.normal(k_out, (B, nf, L), dtype=jnp.float32)

    # Conv1d weight (nf, ni, 1), bias=False; BatchNorm1d(nf) eval-mode stats.
    weight = jax.random.normal(k_w, (nf, ni, 1), dtype=jnp.float32) * 0.1
    gamma = 1.0 + 0.1 * jax.random.normal(k_g, (nf,), dtype=jnp.float32)
    beta = 0.1 * jax.random.normal(k_b, (nf,), dtype=jnp.float32)
    running_mean = 0.1 * jax.random.normal(k_m, (nf,), dtype=jnp.float32)
    running_var = jnp.abs(1.0 + 0.1 * jax.random.normal(k_v, (nf,), dtype=jnp.float32))

    eps = 1e-5

    # Pure-JAX reference — computed BEFORE the kernel call, since `out` is
    # donated/aliased into the kernel's output.
    conv_ref = jnp.einsum("fc,bcl->bfl", weight.reshape(nf, ni), inp)
    bn_ref = (conv_ref - running_mean[None, :, None]) / jnp.sqrt(
        running_var[None, :, None] + eps
    ) * gamma[None, :, None] + beta[None, :, None]
    ref = jnp.maximum(out + bn_ref, 0.0)
    ref = jax.block_until_ready(ref)

    # Donate the residual so input_output_aliases avoids a defensive copy.
    shortcut1d_fn = jax.jit(shortcut1d, donate_argnums=(1,))
    y = shortcut1d_fn(inp, out, weight, gamma, beta, running_mean, running_var,
                      eps=eps)
    y = jax.block_until_ready(y)

    assert jnp.allclose(y, ref, atol=1e-5, rtol=1e-5), "mismatch vs reference"
    print("KERNEL_OK")
</pallas_src>

<mosaic_0001>
module attributes {stable_mosaic.version = 11 : i64} {
  func.func @kernel(%arg0: i32, %arg1: i32, %arg2: memref<1x4x16xf32, #tpu.memory_space<vmem>>, %arg3: memref<8x4xf32, #tpu.memory_space<vmem>>, %arg4: memref<8x1xf32, #tpu.memory_space<vmem>>, %arg5: memref<1x8x16xf32, #tpu.memory_space<vmem>>, %arg6: memref<1x8x16xf32, #tpu.memory_space<vmem>>) attributes {dimension_semantics = [#tpu.dimension_semantics<parallel>, #tpu.dimension_semantics<parallel>], iteration_bounds = array<i64: 2, 1>, scalar_prefetch = 0 : i64, scratch_operands = 0 : i64, tpu.core_type = #tpu.core_type<tc>, window_params = [{transform_indices = @transform_0, window_bounds = array<i64: 1, 4, 16>}, {pipeline_mode = #tpu.pipeline_mode<synchronous>, transform_indices = @transform_1, window_bounds = array<i64: 8, 4>}, {pipeline_mode = #tpu.pipeline_mode<synchronous>, transform_indices = @transform_2, window_bounds = array<i64: 8, 1>}, {transform_indices = @transform_3, window_bounds = array<i64: 1, 8, 16>}, {transform_indices = @transform_4, window_bounds = array<i64: 1, 8, 16>}]} {
    %c0 = arith.constant 0 : index
    %c0_0 = arith.constant 0 : index
    %0 = vector.load %arg3[%c0, %c0_0] : memref<8x4xf32, #tpu.memory_space<vmem>>, vector<8x4xf32>
    %c0_1 = arith.constant 0 : index
    %c0_2 = arith.constant 0 : index
    %1 = vector.load %arg4[%c0_1, %c0_2] : memref<8x1xf32, #tpu.memory_space<vmem>>, vector<8x1xf32>
    %2 = vector.shape_cast %1 : vector<8x1xf32> to vector<8x1xf32>
    %3 = vector.broadcast %2 : vector<8x1xf32> to vector<8x16xf32>
    %c0_3 = arith.constant 0 : index
    %c0_4 = arith.constant 0 : index
    %c0_5 = arith.constant 0 : index
    %4 = vector.load %arg5[%c0_3, %c0_4, %c0_5] : memref<1x8x16xf32, #tpu.memory_space<vmem>>, vector<1x8x16xf32>
    %5 = vector.shape_cast %4 : vector<1x8x16xf32> to vector<8x16xf32>
    %c0_6 = arith.constant 0 : index
    %c0_7 = arith.constant 0 : index
    %c0_8 = arith.constant 0 : index
    %6 = vector.load %arg2[%c0_6, %c0_7, %c0_8] : memref<1x4x16xf32, #tpu.memory_space<vmem>>, vector<1x4x16xf32>
    %7 = vector.shape_cast %6 : vector<1x4x16xf32> to vector<4x16xf32>
    %8 = arith.addf %5, %3 : vector<8x16xf32>
    %9 = vector.extract_strided_slice %0 {offsets = [0, 0], sizes = [8, 1], strides = [1, 1]} : vector<8x4xf32> to vector<8x1xf32>
    %10 = vector.extract_strided_slice %7 {offsets = [0, 0], sizes = [1, 16], strides = [1, 1]} : vector<4x16xf32> to vector<1x16xf32>
    %11 = vector.broadcast %9 : vector<8x1xf32> to vector<8x16xf32>
    %12 = vector.broadcast %10 : vector<1x16xf32> to vector<8x16xf32>
    %13 = arith.mulf %11, %12 : vector<8x16xf32>
    %14 = arith.addf %8, %13 : vector<8x16xf32>
    %15 = vector.extract_strided_slice %0 {offsets = [0, 1], sizes = [8, 1], strides = [1, 1]} : vector<8x4xf32> to vector<8x1xf32>
    %16 = vector.extract_strided_slice %7 {offsets = [1, 0], sizes = [1, 16], strides = [1, 1]} : vector<4x16xf32> to vector<1x16xf32>
    %17 = vector.broadcast %15 : vector<8x1xf32> to vector<8x16xf32>
    %18 = vector.broadcast %16 : vector<1x16xf32> to vector<8x16xf32>
    %19 = arith.mulf %17, %18 : vector<8x16xf32>
    %20 = arith.addf %14, %19 : vector<8x16xf32>
    %21 = vector.extract_strided_slice %0 {offsets = [0, 2], sizes = [8, 1], strides = [1, 1]} : vector<8x4xf32> to vector<8x1xf32>
    %22 = vector.extract_strided_slice %7 {offsets = [2, 0], sizes = [1, 16], strides = [1, 1]} : vector<4x16xf32> to vector<1x16xf32>
    %23 = vector.broadcast %21 : vector<8x1xf32> to vector<8x16xf32>
    %24 = vector.broadcast %22 : vector<1x16xf32> to vector<8x16xf32>
    %25 = arith.mulf %23, %24 : vector<8x16xf32>
    %26 = arith.addf %20, %25 : vector<8x16xf32>
    %27 = vector.extract_strided_slice %0 {offsets = [0, 3], sizes = [8, 1], strides = [1, 1]} : vector<8x4xf32> to vector<8x1xf32>
    %28 = vector.extract_strided_slice %7 {offsets = [3, 0], sizes = [1, 16], strides = [1, 1]} : vector<4x16xf32> to vector<1x16xf32>
    %29 = vector.broadcast %27 : vector<8x1xf32> to vector<8x16xf32>
    %30 = vector.broadcast %28 : vector<1x16xf32> to vector<8x16xf32>
    %31 = arith.mulf %29, %30 : vector<8x16xf32>
    %32 = arith.addf %26, %31 : vector<8x16xf32>
    %cst = arith.constant 0.000000e+00 : f32
    %33 = vector.broadcast %cst : f32 to vector<8x16xf32>
    %34 = arith.maximumf %32, %33 : vector<8x16xf32>
    %c0_9 = arith.constant 0 : index
    %c0_10 = arith.constant 0 : index
    %c0_11 = arith.constant 0 : index
    %35 = vector.load %arg6[%c0_9, %c0_10, %c0_11] : memref<1x8x16xf32, #tpu.memory_space<vmem>>, vector<1x8x16xf32>
    %36 = vector.shape_cast %35 : vector<1x8x16xf32> to vector<8x16xf32>
    %37 = vector.shape_cast %34 : vector<8x16xf32> to vector<1x8x16xf32>
    tpu.vector_store %arg6[%c0_9, %c0_10, %c0_11], %37 {strides = array<i32>} : memref<1x8x16xf32, #tpu.memory_space<vmem>>, vector<1x8x16xf32>,
    return
  }
  func.func @transform_0(%arg0: i32, %arg1: i32) -> (i32, i32, i32) {
    %c0_i32 = arith.constant 0 : i32
    %c0_i32_0 = arith.constant 0 : i32
    return %arg0, %c0_i32, %arg1 : i32, i32, i32
  }
  func.func @transform_1(%arg0: i32, %arg1: i32) -> (i32, i32) {
    %c0_i32 = arith.constant 0 : i32
    %c0_i32_0 = arith.constant 0 : i32
    %c0_i32_1 = arith.constant 0 : i32
    return %c0_i32, %c0_i32_0 : i32, i32
  }
  func.func @transform_2(%arg0: i32, %arg1: i32) -> (i32, i32) {
    %c0_i32 = arith.constant 0 : i32
    %c0_i32_0 = arith.constant 0 : i32
    %c0_i32_1 = arith.constant 0 : i32
    return %c0_i32, %c0_i32_0 : i32, i32
  }
  func.func @transform_3(%arg0: i32, %arg1: i32) -> (i32, i32, i32) {
    %c0_i32 = arith.constant 0 : i32
    %c0_i32_0 = arith.constant 0 : i32
    return %arg0, %c0_i32, %arg1 : i32, i32, i32
  }
  func.func @transform_4(%arg0: i32, %arg1: i32) -> (i32, i32, i32) {
    %c0_i32 = arith.constant 0 : i32
    %c0_i32_0 = arith.constant 0 : i32
    return %arg0, %c0_i32, %arg1 : i32, i32, i32
  }
}

</mosaic_0001>

<llo_original>
// kernel: shortcut1d.1
$region0: #{shortcut1d.1}
  #allocation0 [shape = 'u32[]', space=smem, size = 0x4, offset = 0x4, fixed_abs, tag = 'smem constant byte address 0x4 - core index']
  #allocation1 [shape = 'u32[72,128]{1,0:T(1,128)}', space=vmem, size = 0x9000, scoped, tag = 'internal scratch']
  %s0 = inlined_call_operand.vmem [shape: f32[2,4,16], index: 0, kind: input, shape index: {}]
  %s1 = inlined_call_operand.vmem [shape: f32[8,4], index: 1, kind: input, shape index: {}]
  %s2 = inlined_call_operand.vmem [shape: f32[8,1], index: 2, kind: input, shape index: {}]
  %s3 = inlined_call_operand.hbm [shape: f32[2,8,16], index: 3, kind: input, shape index: {}, may-alias: {3,4}]
  %s4 = inlined_call_operand.hbm [shape: f32[2,8,16], index: 4, kind: output, shape index: {}, may-alias: {3,4}]
  %s5 = sld [smem:[#allocation0]]
  $region53: #{shortcut1d.1} parent=0
    _
  %s7 = ssub.s32 1, %s5
  %s8 = scalar_select 0, %s7, %s5
  $region1: #{shortcut1d.1} parent=0
    #allocation2 [shape = 'u8[8192]{0}', space=vmem, size = 0x2000, scoped, tag = 'input window, operand 3']
    #allocation3 [shape = 's32[2]{0}', space=sflag, size = 0x8, scoped, tag = 'scoped memory for shortcut1d.1']
    #allocation4 [shape = 's32[2]{0}', space=sflag, size = 0x8, scoped, tag = 'scoped memory for shortcut1d.1']
    #allocation5 [shape = 'u8[8192]{0}', space=vmem, size = 0x2000, scoped, tag = 'output window, operand 0']
    %9 = vsyncpa [#allocation3], 0
    %s10 = scalar_lea.sflag [#allocation3], 1
    %11 = vsyncpa %s10, 0
    %12 = vsyncpa [#allocation4], 0
    %s13 = scalar_lea.sflag [#allocation4], 1
    %14 = vsyncpa %s13, 0
    loop: start=0, step=1, limit=4
    $region2: #{shortcut1d.1} parent=1 // loop_pre_header
      _
    $region3: #{shortcut1d.1} parent=1 // loop_header
      %s16 = sphi 0, %s20
      %p17 = scmp.ge.s32.totalorder %s16, 4
      %s23 = sphi 0, %s35
      %s24 = sphi 0, %s31
      %s25 = sphi 0, %s23
      %s26 = sphi 0, %s24
      %s27 = sphi 0, %s25
      %s28 = sphi 0, %s26
      %s40 = sphi 0, %s42
      %s43 = sphi 0, %s40
      %s44 = sphi 0, %s43
      %s60 = sphi 0, %s44
      %s64 = sphi 0, %s64
      %s66 = sphi 0, %s64
      %s67 = sphi 0, %s66
      %s81 = sphi 0, %s67
      %s85 = sphi 0, %s85
      %s87 = sphi 0, %s85
      %s88 = sphi 0, %s87
      %s102 = sphi 0, %s88
      %s110 = sphi 0, %s112
      %s113 = sphi 0, %s110
      %s114 = sphi 0, %s113
      %s130 = sphi 0, %s114
      %s138 = sphi 0, %s140
      %s141 = sphi 0, %s138
      %s142 = sphi 0, %s141
      %s158 = sphi 0, %s142
    $region4: #{shortcut1d.1} parent=1 // loop_header_branch
      %19 = sbr.rel (%p17) target = $region8
    $region5: #{shortcut1d.1} parent=1 // loop_body
      %s21 = ssub.s32 %s16, 1
      %s22 = ssub.s32 %s16, 2
      %s29 = sadd.s32 1, %s24
      %p30 = scmp.ge.s32.totalorder %s29, 1
      %s31 = scalar_select %p30, 0, %s29
      %s32 = sadd.s32 1, %s23
      %s33 = scalar_select %p30, %s32, %s23
      %p34 = scmp.ge.s32.totalorder %s33, 2
      %s35 = scalar_select %p34, 0, %s33
      %s36 = ssub.s32 %s23, %s35
      %s37 = ssub.s32 %s24, %s31
      %s38 = sor.u32 %s36, %s37
      %p39 = scmp.eq.s32.totalorder %s38, 0
      %s41 = sadd.s32 %s40, 1
      %s42 = scalar_select %p39, %s40, %s41
      %p45 = pneg %p39
      %p46 = scmp.eq.s32.totalorder %s16, 1
      %p47 = por %p45, %p46
      %p48 = scmp.ne.s32.totalorder %s40, %s43
      %p49 = scmp.eq.s32.totalorder %s16, 0
      %p50 = por %p48, %p49
      %p51 = scmp.ne.s32.totalorder %s40, %s43
      %p52 = scmp.eq.s32.totalorder %s21, 1
      %p53 = por %p51, %p52
      %p54 = scmp.ne.s32.totalorder %s43, %s44
      %p55 = scmp.eq.s32.totalorder %s21, 0
      %p56 = por %p54, %p55
      %p57 = scmp.ne.s32.totalorder %s43, %s44
      %p58 = scmp.eq.s32.totalorder %s22, 1
      %p59 = por %p57, %p58
      %p61 = scmp.ne.s32.totalorder %s44, %s60
      %p62 = scmp.eq.s32.totalorder %s22, 0
      %p63 = por %p61, %p62
      %s65 = sadd.s32 %s64, 1
      %p68 = scmp.eq.s32.totalorder %s16, 1
      %p69 = scmp.ne.s32.totalorder %s64, %s66
      %p70 = scmp.eq.s32.totalorder %s16, 0
      %p71 = por %p69, %p70
      %p72 = scmp.ne.s32.totalorder %s64, %s66
      %p73 = scmp.eq.s32.totalorder %s21, 1
      %p74 = por %p72, %p73
      %p75 = scmp.ne.s32.totalorder %s66, %s67
      %p76 = scmp.eq.s32.totalorder %s21, 0
      %p77 = por %p75, %p76
      %p78 = scmp.ne.s32.totalorder %s66, %s67
      %p79 = scmp.eq.s32.totalorder %s22, 1
      %p80 = por %p78, %p79
      %p82 = scmp.ne.s32.totalorder %s67, %s81
      %p83 = scmp.eq.s32.totalorder %s22, 0
      %p84 = por %p82, %p83
      %s86 = sadd.s32 %s85, 1
      %p89 = scmp.eq.s32.totalorder %s16, 1
      %p90 = scmp.ne.s32.totalorder %s85, %s87
      %p91 = scmp.eq.s32.totalorder %s16, 0
      %p92 = por %p90, %p91
      %p93 = scmp.ne.s32.totalorder %s85, %s87
      %p94 = scmp.eq.s32.totalorder %s21, 1
      %p95 = por %p93, %p94
      %p96 = scmp.ne.s32.totalorder %s87, %s88
      %p97 = scmp.eq.s32.totalorder %s21, 0
      %p98 = por %p96, %p97
      %p99 = scmp.ne.s32.totalorder %s87, %s88
      %p100 = scmp.eq.s32.totalorder %s22, 1
      %p101 = por %p99, %p100
      %p103 = scmp.ne.s32.totalorder %s88, %s102
      %p104 = scmp.eq.s32.totalorder %s22, 0
      %p105 = por %p103, %p104
      %s106 = ssub.s32 %s23, %s35
      %s107 = ssub.s32 %s24, %s31
      %s108 = sor.u32 %s106, %s107
      %p109 = scmp.eq.s32.totalorder %s108, 0
      %s111 = sadd.s32 %s110, 1
      %s112 = scalar_select %p109, %s110, %s111
      %p115 = pneg %p109
      %p116 = scmp.eq.s32.totalorder %s16, 1
      %p117 = por %p115, %p116
      %p118 = scmp.ne.s32.totalorder %s110, %s113
      %p119 = scmp.eq.s32.totalorder %s16, 0
      %p120 = por %p118, %p119
      %p121 = scmp.ne.s32.totalorder %s110, %s113
      %p122 = scmp.eq.s32.totalorder %s21, 1
      %p123 = por %p121, %p122
      %p124 = scmp.ne.s32.totalorder %s113, %s114
      %p125 = scmp.eq.s32.totalorder %s21, 0
      %p126 = por %p124, %p125
      %p127 = scmp.ne.s32.totalorder %s113, %s114
      %p128 = scmp.eq.s32.totalorder %s22, 1
      %p129 = por %p127, %p128
      %p131 = scmp.ne.s32.totalorder %s114, %s130
      %p132 = scmp.eq.s32.totalorder %s22, 0
      %p133 = por %p131, %p132
      %s134 = ssub.s32 %s23, %s35
      %s135 = ssub.s32 %s24, %s31
      %s136 = sor.u32 %s134, %s135
      %p137 = scmp.eq.s32.totalorder %s136, 0
      %s139 = sadd.s32 %s138, 1
      %s140 = scalar_select %p137, %s138, %s139
      %p143 = pneg %p137
      %p144 = scmp.eq.s32.totalorder %s16, 1
      %p145 = por %p143, %p144
      %p146 = scmp.ne.s32.totalorder %s138, %s141
      %p147 = scmp.eq.s32.totalorder %s16, 0
      %p148 = por %p146, %p147
      %p149 = scmp.ne.s32.totalorder %s138, %s141
      %p150 = scmp.eq.s32.totalorder %s21, 1
      %p151 = por %p149, %p150
      %p152 = scmp.ne.s32.totalorder %s141, %s142
      %p153 = scmp.eq.s32.totalorder %s21, 0
      %p154 = por %p152, %p153
      %p155 = scmp.ne.s32.totalorder %s141, %s142
      %p156 = scmp.eq.s32.totalorder %s22, 1
      %p157 = por %p155, %p156
      %p159 = scmp.ne.s32.totalorder %s142, %s158
      %p160 = scmp.eq.s32.totalorder %s22, 0
      %p161 = por %p159, %p160
      %p162 = scmp.le.s32.totalorder 1, %s16
      %p163 = scmp.lt.s32.totalorder %s16, 3
      %p164 = pnand %p162, %p163
      %p165 = pneg %p164
      // Predicated region
      $region9: #{shortcut1d.1} parent=5 // pred_check
        _
      $region10: #{shortcut1d.1} parent=5 // pred_check_branch
        %167 = sbr.rel (%p164) target = $region12
      $region11: #{shortcut1d.1} parent=5 // pred_region
        %s168 = ssub.s32 %s16, 1
        // Predicated region
        $region13: #{shortcut1d.1} parent=11 // pred_check
          %p169 = pneg %p77
        $region14: #{shortcut1d.1} parent=11 // pred_check_branch
          %171 = sbr.rel (%p169) target = $region16
        $region15: #{shortcut1d.1} parent=11 // pred_region
          _
        $region16: #{shortcut1d.1} parent=11 // pred_fallthru
          _
        // Predicated region
        $region17: #{shortcut1d.1} parent=11 // pred_check
          %p172 = pneg %p98
        $region18: #{shortcut1d.1} parent=11 // pred_check_branch
          %174 = sbr.rel (%p172) target = $region20
        $region19: #{shortcut1d.1} parent=11 // pred_region
          _
        $region20: #{shortcut1d.1} parent=11 // pred_fallthru
          _
      $region12: #{shortcut1d.1} parent=5 // pred_fallthru
        _
      %p175 = scmp.lt.s32.totalorder %s16, 2
      // Predicated region
      $region21: #{shortcut1d.1} parent=5 // pred_check
        %p176 = pneg %p175
      $region22: #{shortcut1d.1} parent=5 // pred_check_branch
        %178 = sbr.rel (%p176) target = $region24
      $region23: #{shortcut1d.1} parent=5 // pred_region
        // Predicated region
        $region25: #{shortcut1d.1} parent=23 // pred_check
          %p179 = pneg %p50
        $region26: #{shortcut1d.1} parent=23 // pred_check_branch
          %181 = sbr.rel (%p179) target = $region28
        $region27: #{shortcut1d.1} parent=23 // pred_region
          %p182 = scmp.lt.s32.totalorder %s23, 1
          %s183 = scalar_select %p182, %s23, 1
          %p184 = scmp.lt.s32.totalorder %s24, 0
          %s185 = scalar_select %p184, %s24, 0
          %s186 = sadd.s32 %s185, %s183
          %s187 = smul.addr %s186, 4
          %s188 = scalar_lea.vmem %s0, %s187
        $region28: #{shortcut1d.1} parent=23 // pred_fallthru
          _
        // Predicated region
        $region29: #{shortcut1d.1} parent=23 // pred_check
          %p189 = pneg %p120
        $region30: #{shortcut1d.1} parent=23 // pred_check_branch
          %191 = sbr.rel (%p189) target = $region32
        $region31: #{shortcut1d.1} parent=23 // pred_region
          %s192 = sand.u32 %s110, 1
          %s193 = scalar_lea.sflag [#allocation3], %s192
          %s194 = sand.u32 %s110, 1
          %s195 = smul.addr %s194, 8
          %s196 = scalar_lea.vmem [#allocation2], %s195
          %198 = vsyncadd %s193, 0
          %s199 = sadd.s32 %s24, %s23
          %s200 = smul.addr %s199, 8
          %s201 = scalar_lea.hbm %s3, %s200
          %s203 = sshll.u32 %s201, 4
          %s204 = int_to_ptr.hbm [resolvable:$true] %s203
          %s205 = sshll.u32 %s196, 4
          %s206 = int_to_ptr.vmem [resolvable:$true] %s205
          %208 = dma.hbm_to_vmem [thread:$0]  %s204, 128, %s206, %s193
        $region32: #{shortcut1d.1} parent=23 // pred_fallthru
          _
      $region24: #{shortcut1d.1} parent=5 // pred_fallthru
        _
      %p209 = scmp.le.s32.totalorder 1, %s16
      %p210 = scmp.lt.s32.totalorder %s16, 3
      %p211 = pnand %p209, %p210
      %p212 = pneg %p211
      // Predicated region
      $region33: #{shortcut1d.1} parent=5 // pred_check
        _
      $region34: #{shortcut1d.1} parent=5 // pred_check_branch
        %214 = sbr.rel (%p211) target = $region36
      $region35: #{shortcut1d.1} parent=5 // pred_region
        %s215 = ssub.s32 %s16, 1
        %s216 = sand.u32 %s113, 1
        %s217 = scalar_lea.sflag [#allocation3], %s216
        %s218 = sand.u32 %s113, 1
        %s219 = smul.addr %s218, 8
        %s220 = scalar_lea.vmem [#allocation2], %s219
        // Predicated region
        $region37: #{shortcut1d.1} parent=35 // pred_check
          %p221 = pneg %p126
        $region38: #{shortcut1d.1} parent=35 // pred_check_branch
          %223 = sbr.rel (%p221) target = $region40
        $region39: #{shortcut1d.1} parent=35 // pred_region
          %225 = dma.done %s217, 128
        $region40: #{shortcut1d.1} parent=35 // pred_fallthru
          _
        %p226 = scmp.lt.s32.totalorder %s25, 1
        %s227 = scalar_select %p226, %s25, 1
        %p228 = scmp.lt.s32.totalorder %s26, 0
        %s229 = scalar_select %p228, %s26, 0
        %s230 = sadd.s32 %s229, %s227
        %s231 = smul.addr %s230, 4
        %s232 = scalar_lea.vmem %s0, %s231
        %p233 = pneg %p56
        %p234 = pneg %p53
        %p235 = pneg %p77
        %p236 = pneg %p74
        %p237 = pneg %p98
        %p238 = pneg %p95
        %s239 = sand.u32 %s113, 1
        %s240 = scalar_lea.sflag [#allocation3], %s239
        %s241 = sand.u32 %s113, 1
        %s242 = smul.addr %s241, 8
        %s243 = scalar_lea.vmem [#allocation2], %s242
        %p244 = pneg %p126
        %p245 = pneg %p123
        %p246 = pneg %p154
        %p247 = pneg %p151
        %s248 = sand.u32 %s141, 1
        %s249 = scalar_lea.sflag [#allocation4], %s248
        %s250 = sand.u32 %s141, 1
        %s251 = smul.addr %s250, 8
        %s252 = scalar_lea.vmem [#allocation5], %s251
        %p253 = scmp.lt.s32.totalorder %s25, 1
        %s254 = scalar_select %p253, %s25, 1
        %p255 = scmp.lt.s32.totalorder %s26, 0
        %s256 = scalar_select %p255, %s26, 0
        %s257 = sadd.s32 %s256, %s254
        %s258 = smul.addr %s257, 4
        %s259 = scalar_lea.vmem %s0, %s258
        %v260 = vld [vmem:[%s1] sm:$0xff]
        %v261 = vld [vmem:[%s2] sm:$0xff]
        %263 = vset.pattern.permute.xlu0 0
        %264 = vperm.xlu0 %263, %v261
        %v265 = vpop.permute.xlu0 %264
        %v267 = vld [vmem:[%s220] sm:$0xff]
        %v268 = vld [vmem:[%s259] sm:$0xf]
        %v269 = vadd.f32 %v267, %v265
        %271 = vset.pattern.permute.xlu0 0
        %272 = vperm.xlu0 %271, %v260
        %v273 = vpop.permute.xlu0 %272
        %v275 = vperm.slane %v268, 0
        %v276 = vmul.f32 %v273, %v275
        %v277 = vadd.f32 %v269, %v276
        %278 = vset.pattern.permute.xlu0 1
        %279 = vperm.xlu0 %278, %v260
        %v280 = vpop.permute.xlu0 %279
        %v282 = vperm.slane %v268, 1
        %v283 = vmul.f32 %v280, %v282
        %v284 = vadd.f32 %v277, %v283
        %285 = vset.pattern.permute.xlu0 2
        %286 = vperm.xlu0 %285, %v260
        %v287 = vpop.permute.xlu0 %286
        %v289 = vperm.slane %v268, 2
        %v290 = vmul.f32 %v287, %v289
        %v291 = vadd.f32 %v284, %v290
        %292 = vset.pattern.permute.xlu0 3
        %293 = vperm.xlu0 %292, %v260
        %v294 = vpop.permute.xlu0 %293
        %v296 = vperm.slane %v268, 3
        %v297 = vmul.f32 %v294, %v296
        %v298 = vadd.f32 %v291, %v297
        %v299 = vmax.f32 %v298, 0.0
        %vm300 = vcmask 130048
        %301 = vst.msk [vmem:[%s252] sm:$0xff] %vm300, %v299
        %s302 = sand.u32 %s141, 1
        %s303 = scalar_lea.sflag [#allocation4], %s302
        %s304 = sand.u32 %s141, 1
        %s305 = smul.addr %s304, 8
        %s306 = scalar_lea.vmem [#allocation5], %s305
        // Predicated region
        $region41: #{shortcut1d.1} parent=35 // pred_check
          %p307 = pneg %p151
        $region42: #{shortcut1d.1} parent=35 // pred_check_branch
          %309 = sbr.rel (%p307) target = $region44
        $region43: #{shortcut1d.1} parent=35 // pred_region
          %311 = vsyncadd %s303, 0
          %s312 = sadd.s32 %s26, %s25
          %s313 = smul.addr %s312, 8
          %s314 = scalar_lea.hbm %s4, %s313
          %s316 = sshll.u32 %s306, 4
          %s317 = int_to_ptr.vmem [resolvable:$true] %s316
          %s318 = sshll.u32 %s314, 4
          %s319 = int_to_ptr.hbm [resolvable:$true] %s318
          %321 = dma.vmem_to_hbm [thread:$0]  %s317, 128, %s319, %s303
        $region44: #{shortcut1d.1} parent=35 // pred_fallthru
          _
      $region36: #{shortcut1d.1} parent=5 // pred_fallthru
        _
      %p322 = scmp.le.s32.totalorder 2, %s16
      // Predicated region
      $region45: #{shortcut1d.1} parent=5 // pred_check
        %p323 = pneg %p322
      $region46: #{shortcut1d.1} parent=5 // pred_check_branch
        %325 = sbr.rel (%p323) target = $region48
      $region47: #{shortcut1d.1} parent=5 // pred_region
        %s326 = ssub.s32 %s16, 2
        // Predicated region
        $region49: #{shortcut1d.1} parent=47 // pred_check
          %p327 = pneg %p157
        $region50: #{shortcut1d.1} parent=47 // pred_check_branch
          %329 = sbr.rel (%p327) target = $region52
        $region51: #{shortcut1d.1} parent=47 // pred_region
          %s330 = sand.u32 %s142, 1
          %s331 = scalar_lea.sflag [#allocation4], %s330
          %s332 = sand.u32 %s142, 1
          %s333 = smul.addr %s332, 8
          %s334 = scalar_lea.vmem [#allocation5], %s333
          %336 = dma.done %s331, 128
        $region52: #{shortcut1d.1} parent=47 // pred_fallthru
          _
      $region48: #{shortcut1d.1} parent=5 // pred_fallthru
        _
    $region6: #{shortcut1d.1} parent=1 // loop_footer
      %s20 = sadd.s32 1, %s16
    $region7: #{shortcut1d.1} parent=1 // loop_footer_branch
      %15 = sbr.rel target = $region3
    $region8: #{shortcut1d.1} parent=1 // loop_exit
      _
    %337 = vsyncpa [#allocation3], 1
    %s338 = scalar_lea.sflag [#allocation3], 1
    %339 = vsyncpa %s338, 1
    %340 = vsyncpa [#allocation4], 1
    %s341 = scalar_lea.sflag [#allocation4], 1
    %342 = vsyncpa %s341, 1

</llo_original>
